<compile_context>
chip_gen: v5e
topology: v5e:2x2
jax: 0.10.0
libtpu: 0.0.40
codegen_flags: <defaults>
</compile_context>

<pallas_src>
import functools

import jax
import jax.numpy as jnp
import numpy as np
from jax.experimental import pallas as pl
from jax.experimental.pallas import tpu as pltpu


_MAX_ROW_TILE = 256                 # MXU-friendly, fits v7x 64 MiB VMEM budget
_VMEM_LIMIT = 48 * 1024 * 1024      # leave headroom below v7x physical VMEM


def _row_tile(n):
    return n if n <= _MAX_ROW_TILE else _MAX_ROW_TILE


def _dense_compiler_params():
    return pltpu.CompilerParams(
        dimension_semantics=("parallel",),
        vmem_limit_bytes=_VMEM_LIMIT)


# ----------------------------- Pallas kernels -----------------------------

def _dense_kernel(*refs, n_in, act):
    """o = act( (sum_i x_i @ w_i) * gain + bias ); bf16 matmul, fp32 else."""
    x_refs = refs[:n_in]
    w_refs = refs[n_in:2 * n_in]
    g_ref, b_ref, o_ref = refs[2 * n_in], refs[2 * n_in + 1], refs[2 * n_in + 2]
    acc = jnp.dot(x_refs[0][...].astype(jnp.bfloat16), w_refs[0][...],
                  preferred_element_type=jnp.float32)
    for i in range(1, n_in):
        acc = acc + jnp.dot(x_refs[i][...].astype(jnp.bfloat16), w_refs[i][...],
                            preferred_element_type=jnp.float32)
    y = acc * g_ref[...] + b_ref[...]
    if act == "tanh":
        y = jnp.tanh(y)
    elif act == "relu":
        y = jnp.maximum(y, 0.0)
    o_ref[...] = y


def fused_dense(xs, ws, gain, bias, act="none"):
    """Row-tiled fused multi-matmul + per-feature affine + activation.

    xs: list of (n, k_i) fp32 activations, tiled over rows.
    ws: list of (k_i, m) bf16 weights, held resident across row tiles.
    """
    n = xs[0].shape[0]
    m = ws[0].shape[1]
    tile = _row_tile(n)
    grid = (pl.cdiv(n, tile),)

    in_specs = []
    for x in xs:
        in_specs.append(pl.BlockSpec((tile, x.shape[1]), lambda i: (i, 0)))
    for w in ws:
        in_specs.append(pl.BlockSpec(w.shape, lambda i: (0, 0)))
    in_specs += [pl.BlockSpec((1, m), lambda i: (0, 0)),
                 pl.BlockSpec((1, m), lambda i: (0, 0))]

    return pl.pallas_call(
        functools.partial(_dense_kernel, n_in=len(xs), act=act),
        out_shape=jax.ShapeDtypeStruct((n, m), jnp.float32),
        grid=grid,
        in_specs=in_specs,
        out_specs=pl.BlockSpec((tile, m), lambda i: (i, 0)),
        compiler_params=_dense_compiler_params(),
    )(*xs, *ws,
      gain.reshape(1, m).astype(jnp.float32),
      bias.reshape(1, m).astype(jnp.float32))


def _final_kernel(x_ref, w_ref, g_ref, b_ref, mix_ref, o_ref):
    # fc3 + bn3(eval) + output_scale/output_mean + relu + *mix, fused.
    # (scale/mean already folded into gain/bias by the wrapper.)
    y = jnp.dot(x_ref[...].astype(jnp.bfloat16), w_ref[...],
                preferred_element_type=jnp.float32)
    o_ref[...] = jnp.maximum(y * g_ref[...] + b_ref[...], 0.0) * mix_ref[...]


def final_dense(x, w, gain, bias, mix):
    n, k = x.shape
    m = w.shape[1]
    tile = _row_tile(n)
    grid = (pl.cdiv(n, tile),)
    return pl.pallas_call(
        _final_kernel,
        out_shape=jax.ShapeDtypeStruct((n, m), jnp.float32),
        grid=grid,
        in_specs=[pl.BlockSpec((tile, k), lambda i: (i, 0)),
                  pl.BlockSpec((k, m), lambda i: (0, 0)),
                  pl.BlockSpec((1, m), lambda i: (0, 0)),
                  pl.BlockSpec((1, m), lambda i: (0, 0)),
                  pl.BlockSpec((tile, m), lambda i: (i, 0))],
        out_specs=pl.BlockSpec((tile, m), lambda i: (i, 0)),
        compiler_params=_dense_compiler_params(),
    )(x, w,
      gain.reshape(1, m).astype(jnp.float32),
      bias.reshape(1, m).astype(jnp.float32),
      mix)


def _bilstm_kernel(xp_ref, whf_ref, whb_ref, of_ref, ob_ref,
                   *, hidden, t_len, batch):
    """Fused bidirectional LSTM layer: one in-VMEM fori_loop over T runs both
    directions (forward reads xp[s, :, :4H], backward reads xp[T-1-s, :, 4H:]).
    Cell state / gates are fp32; the recurrent matmul operands are bf16."""
    h = hidden

    def cell(gates, c_prev):
        i = jax.nn.sigmoid(gates[:, 0:h])
        f = jax.nn.sigmoid(gates[:, h:2 * h])
        g = jnp.tanh(gates[:, 2 * h:3 * h])
        o = jax.nn.sigmoid(gates[:, 3 * h:4 * h])
        c = f * c_prev + i * g
        return o * jnp.tanh(c), c

    def step(s, carry):
        hf, cf, hb, cb = carry
        tb = t_len - 1 - s
        xp_f = xp_ref[s]                      # (B, 8H) row for forward dir
        xp_b = xp_ref[tb]                     # (B, 8H) row for backward dir
        gf = xp_f[:, 0:4 * h] + jnp.dot(hf.astype(jnp.bfloat16), whf_ref[...],
                                        preferred_element_type=jnp.float32)
        hf, cf = cell(gf, cf)
        of_ref[s] = hf
        gb = xp_b[:, 4 * h:8 * h] + jnp.dot(hb.astype(jnp.bfloat16), whb_ref[...],
                                            preferred_element_type=jnp.float32)
        hb, cb = cell(gb, cb)
        ob_ref[tb] = hb
        return hf, cf, hb, cb

    z = jnp.zeros((batch, h), jnp.float32)
    jax.lax.fori_loop(0, t_len, step, (z, z, z, z))


def bilstm_layer(xproj, whh_f_t, whh_b_t, hidden):
    """xproj: (T, B, 8H) fused gate pre-activations for both directions
    (x@W_ih^T + b_ih + b_hh).  whh_*_t: (H, 4H) bf16 recurrent weights."""
    t_len, b, _ = xproj.shape
    vmem = lambda: pl.BlockSpec(memory_space=pltpu.MemorySpace.VMEM)
    return pl.pallas_call(
        functools.partial(_bilstm_kernel, hidden=hidden, t_len=t_len, batch=b),
        out_shape=(jax.ShapeDtypeStruct((t_len, b, hidden), jnp.float32),
                   jax.ShapeDtypeStruct((t_len, b, hidden), jnp.float32)),
        in_specs=[vmem(), vmem(), vmem()],
        out_specs=(vmem(), vmem()),
        compiler_params=pltpu.CompilerParams(vmem_limit_bytes=_VMEM_LIMIT),
    )(xproj, whh_f_t, whh_b_t)


# ------------------------------ model glue ---------------------------------

def bn_fold(gamma, beta, rmean, rvar, eps=1e-5):
    """Fold eval-mode BatchNorm1d into a per-feature (gain, bias)."""
    g = gamma / jnp.sqrt(rvar + eps)
    return g, beta - rmean * g


def lstm_forward(h_flat, t_len, b, lstm_params, num_layers, hidden_lstm):
    """Bidirectional multi-layer LSTM (eval: dropout is a no-op).

    Returns (fwd, bwd) outputs as flattened (t_len*b, H) arrays so downstream
    layers never materialize the direction concat in HBM."""
    H = hidden_lstm
    ones = jnp.ones((8 * H,), jnp.float32)
    of = ob = None
    for layer in range(num_layers):
        w_ih_f, w_hh_f, b_ih_f, b_hh_f = lstm_params[(layer, 0)]
        w_ih_b, w_hh_b, b_ih_b, b_hh_b = lstm_params[(layer, 1)]
        # Fuse both directions' input projections into one (insz, 8H) matmul.
        w_fused = jnp.concatenate([w_ih_f, w_ih_b], axis=0).T   # (insz, 8H)
        bias = jnp.concatenate([b_ih_f + b_hh_f, b_ih_b + b_hh_b])
        if layer == 0:
            xs = [h_flat]
            ws = [w_fused.astype(jnp.bfloat16)]
        else:
            # input = concat(of, ob): split the weight instead of the acts.
            xs = [of, ob]
            ws = [w_fused[:H].astype(jnp.bfloat16),
                  w_fused[H:].astype(jnp.bfloat16)]
        xp = fused_dense(xs, ws, ones, bias, act="none")
        of3, ob3 = bilstm_layer(xp.reshape(t_len, b, 8 * H),
                                w_hh_f.T.astype(jnp.bfloat16),
                                w_hh_b.T.astype(jnp.bfloat16), H)
        of = of3.reshape(t_len * b, H)
        ob = ob3.reshape(t_len * b, H)
    return of, ob


def open_unmix_forward(x, params, cfg):
    # x: (T, B, C, nb_output_bins) magnitude spectrogram.
    t_len, b, c, nb_out = x.shape
    nb_bins = cfg["nb_bins"]
    hidden = cfg["hidden_size"]
    H = cfg["lstm_hidden"]

    mix = x
    xflat = x[..., :nb_bins].reshape(t_len * b, c * nb_bins)   # crop to nb_bins

    # TODO(synk): `normalization.Normalize('overall', ...)` source is not
    # available; implemented as the standard per-bin affine (x+mean)*scale,
    # algebraically folded into the fc1 weight / bias.
    mean_t = jnp.tile(params["input_mean"], c)
    scale_t = jnp.tile(params["input_scale"], c)
    w1 = params["fc1_w"].T                          # (c*nb_bins, hidden)
    w1_folded = scale_t[:, None] * w1
    offset = (mean_t * scale_t) @ w1                # (hidden,), computed once
    g1, b1 = bn_fold(*params["bn1"])
    h = fused_dense([xflat], [w1_folded.astype(jnp.bfloat16)],
                    g1, b1 + g1 * offset, act="tanh")          # fc1+bn1+tanh

    of, ob = lstm_forward(h, t_len, b, params["lstm"], cfg["nb_layers"], H)

    # fc2 over concat([skip, lstm_fwd, lstm_bwd]) without materializing it.
    w2 = params["fc2_w"].T                          # (2*hidden, hidden)
    g2, b2 = bn_fold(*params["bn2"])
    h2 = fused_dense(
        [h, of, ob],
        [w2[:hidden].astype(jnp.bfloat16),
         w2[hidden:hidden + H].astype(jnp.bfloat16),
         w2[hidden + H:].astype(jnp.bfloat16)],
        g2, b2, act="relu")                                    # fc2+bn2+relu

    # fc3 + bn3 + output scale/mean + relu + *mix, all in one kernel.
    g3, b3 = bn_fold(*params["bn3"])
    sc = jnp.tile(params["output_scale"], c)
    mn = jnp.tile(params["output_mean"], c)
    out_flat = final_dense(h2, params["fc3_w"].T.astype(jnp.bfloat16),
                           g3 * sc, b3 * sc + mn,
                           mix.reshape(t_len * b, c * nb_out))
    return out_flat.reshape(t_len, b, c, nb_out)


# --------------------------- pure-JAX reference -----------------------------

def _ref_lstm_dir(xseq, w_ih, w_hh, b_ih, b_hh, hidden, reverse):
    t_len, b, _ = xseq.shape

    def step(carry, x_t):
        h, c = carry
        gates = x_t @ w_ih.T + b_ih + h @ w_hh.T + b_hh
        i = jax.nn.sigmoid(gates[:, :hidden])
        f = jax.nn.sigmoid(gates[:, hidden:2 * hidden])
        g = jnp.tanh(gates[:, 2 * hidden:3 * hidden])
        o = jax.nn.sigmoid(gates[:, 3 * hidden:])
        c = f * c + i * g
        h = o * jnp.tanh(c)
        return (h, c), h

    xs = xseq[::-1] if reverse else xseq
    h0 = jnp.zeros((b, hidden), jnp.float32)
    _, hs = jax.lax.scan(step, (h0, h0), xs)
    return hs[::-1] if reverse else hs


def ref_forward(x, params, cfg):
    t_len, b, c, nb_out = x.shape
    nb_bins = cfg["nb_bins"]
    hidden = cfg["hidden_size"]
    hh = cfg["lstm_hidden"]
    mix = x
    xn = (x[..., :nb_bins] + params["input_mean"]) * params["input_scale"]
    h = xn.reshape(t_len * b, c * nb_bins) @ params["fc1_w"].T
    g1, b1 = bn_fold(*params["bn1"])
    h = jnp.tanh(h * g1 + b1).reshape(t_len, b, hidden)
    out = h
    for layer in range(cfg["nb_layers"]):
        outs = []
        for d in range(2):
            w_ih, w_hh, b_ih, b_hh = params["lstm"][(layer, d)]
            outs.append(_ref_lstm_dir(out, w_ih, w_hh, b_ih, b_hh, hh, d == 1))
        out = jnp.concatenate(outs, axis=-1)
    cat = jnp.concatenate([h, out], axis=-1).reshape(t_len * b, 2 * hidden)
    y = cat @ params["fc2_w"].T
    g2, b2 = bn_fold(*params["bn2"])
    y = jnp.maximum(y * g2 + b2, 0.0)
    y = y @ params["fc3_w"].T
    g3, b3 = bn_fold(*params["bn3"])
    y = (y * g3 + b3).reshape(t_len, b, c, nb_out)
    y = y * params["output_scale"] + params["output_mean"]
    return jnp.maximum(y, 0.0) * mix


# ------------------------------ param init ----------------------------------

def init_params(key, cfg):
    c, nb_bins, nb_out = cfg["nb_channels"], cfg["nb_bins"], cfg["nb_output_bins"]
    hidden, hh, layers = cfg["hidden_size"], cfg["lstm_hidden"], cfg["nb_layers"]
    keys = iter(jax.random.split(key, 64))

    def nrm(shape, scale=0.1):
        return scale * jax.random.normal(next(keys), shape, jnp.float32)

    def bn(n):
        return (1.0 + nrm((n,), 0.05), nrm((n,), 0.05),
                nrm((n,), 0.05), 1.0 + jnp.abs(nrm((n,), 0.05)))

    params = {
        "input_mean": jnp.zeros((nb_bins,), jnp.float32),   # default: None -> zeros
        "input_scale": jnp.ones((nb_bins,), jnp.float32),   # default: None -> ones
        "fc1_w": nrm((hidden, c * nb_bins)),
        "fc2_w": nrm((hidden, hidden * 2)),
        "fc3_w": nrm((nb_out * c, hidden)),
        "bn1": bn(hidden),
        "bn2": bn(hidden),
        "bn3": bn(nb_out * c),
        "output_scale": jnp.ones((nb_out,), jnp.float32),   # as in __init__
        "output_mean": jnp.ones((nb_out,), jnp.float32),    # as in __init__
    }
    lstm = {}
    for layer in range(layers):
        in_size = hidden  # bidirectional: 2*hh == hidden for every layer
        for d in range(2):
            lstm[(layer, d)] = (nrm((4 * hh, in_size)), nrm((4 * hh, hh)),
                                nrm((4 * hh,), 0.05), nrm((4 * hh,), 0.05))
    params["lstm"] = lstm
    return params


# --------------------------------- main --------------------------------------

if __name__ == "__main__":
    # Small synthetic config (64 output bins, max_bin=48, hidden_size=32,
    # bidirectional LSTM hidden 16, 2 layers).
    cfg = dict(nb_frames=8, nb_samples=2, nb_channels=2,
               nb_output_bins=64, nb_bins=48,
               hidden_size=32, lstm_hidden=16, nb_layers=2)

    key = jax.random.PRNGKey(0)
    kp, kx = jax.random.split(key)
    params = init_params(kp, cfg)

    # Magnitude spectrogram input (T, B, C, nb_output_bins), non-negative.
    x = jnp.abs(jax.random.normal(
        kx, (cfg["nb_frames"], cfg["nb_samples"], cfg["nb_channels"],
             cfg["nb_output_bins"]), jnp.float32))

    out = open_unmix_forward(x, params, cfg)
    out = jax.block_until_ready(out)

    ref = jax.block_until_ready(ref_forward(x, params, cfg))
    # bf16 MXU operands (fp32 accumulate / elementwise) -> loosened tolerance.
    np.testing.assert_allclose(np.asarray(out), np.asarray(ref),
                               rtol=2e-2, atol=2e-2)
    print("KERNEL_OK")
</pallas_src>

<mosaic_0001>
module attributes {stable_mosaic.version = 11 : i64} {
  func.func @_dense_kernel(%arg0: i32, %arg1: memref<16x96xf32, #tpu.memory_space<vmem>>, %arg2: memref<96x32xbf16, #tpu.memory_space<vmem>>, %arg3: memref<1x32xf32, #tpu.memory_space<vmem>>, %arg4: memref<1x32xf32, #tpu.memory_space<vmem>>, %arg5: memref<16x32xf32, #tpu.memory_space<vmem>>) attributes {dimension_semantics = [#tpu.dimension_semantics<parallel>], iteration_bounds = array<i64: 1>, scalar_prefetch = 0 : i64, scratch_operands = 0 : i64, tpu.core_type = #tpu.core_type<tc>, window_params = [{transform_indices = @transform_0, window_bounds = array<i64: 16, 96>}, {pipeline_mode = #tpu.pipeline_mode<synchronous>, transform_indices = @transform_1, window_bounds = array<i64: 96, 32>}, {pipeline_mode = #tpu.pipeline_mode<synchronous>, transform_indices = @transform_2, window_bounds = array<i64: 1, 32>}, {pipeline_mode = #tpu.pipeline_mode<synchronous>, transform_indices = @transform_3, window_bounds = array<i64: 1, 32>}, {transform_indices = @transform_4, window_bounds = array<i64: 16, 32>}]} {
    %c0 = arith.constant 0 : index
    %c0_0 = arith.constant 0 : index
    %0 = vector.load %arg1[%c0, %c0_0] : memref<16x96xf32, #tpu.memory_space<vmem>>, vector<16x96xf32>
    %1 = arith.truncf %0 : vector<16x96xf32> to vector<16x96xbf16>
    %c0_1 = arith.constant 0 : index
    %c0_2 = arith.constant 0 : index
    %2 = vector.load %arg2[%c0_1, %c0_2] : memref<96x32xbf16, #tpu.memory_space<vmem>>, vector<96x32xbf16>
    %cst = arith.constant dense<0.000000e+00> : vector<16x32xf32>
    %3 = tpu.matmul %1, %2, %cst {dimension_numbers = #tpu.dot_dimension_numbers<[1], [0], [0], [1], [0, 0, 1, 1], [], []>} : vector<16x96xbf16>, vector<96x32xbf16>, vector<16x32xf32> -> vector<16x32xf32>
    %c0_3 = arith.constant 0 : index
    %c0_4 = arith.constant 0 : index
    %4 = vector.load %arg3[%c0_3, %c0_4] : memref<1x32xf32, #tpu.memory_space<vmem>>, vector<1x32xf32>
    %5 = vector.broadcast %4 : vector<1x32xf32> to vector<16x32xf32>
    %6 = arith.mulf %3, %5 : vector<16x32xf32>
    %c0_5 = arith.constant 0 : index
    %c0_6 = arith.constant 0 : index
    %7 = vector.load %arg4[%c0_5, %c0_6] : memref<1x32xf32, #tpu.memory_space<vmem>>, vector<1x32xf32>
    %8 = vector.broadcast %7 : vector<1x32xf32> to vector<16x32xf32>
    %9 = arith.addf %6, %8 : vector<16x32xf32>
    %10 = math.tanh %9 : vector<16x32xf32>
    %c0_7 = arith.constant 0 : index
    %c0_8 = arith.constant 0 : index
    %11 = vector.load %arg5[%c0_7, %c0_8] : memref<16x32xf32, #tpu.memory_space<vmem>>, vector<16x32xf32>
    tpu.vector_store %arg5[%c0_7, %c0_8], %10 {strides = array<i32>} : memref<16x32xf32, #tpu.memory_space<vmem>>, vector<16x32xf32>,
    return
  }
  func.func @transform_0(%arg0: i32) -> (i32, i32) {
    %c0_i32 = arith.constant 0 : i32
    %c0_i32_0 = arith.constant 0 : i32
    return %arg0, %c0_i32 : i32, i32
  }
  func.func @transform_1(%arg0: i32) -> (i32, i32) {
    %c0_i32 = arith.constant 0 : i32
    %c0_i32_0 = arith.constant 0 : i32
    %c0_i32_1 = arith.constant 0 : i32
    return %c0_i32, %c0_i32_0 : i32, i32
  }
  func.func @transform_2(%arg0: i32) -> (i32, i32) {
    %c0_i32 = arith.constant 0 : i32
    %c0_i32_0 = arith.constant 0 : i32
    %c0_i32_1 = arith.constant 0 : i32
    return %c0_i32, %c0_i32_0 : i32, i32
  }
  func.func @transform_3(%arg0: i32) -> (i32, i32) {
    %c0_i32 = arith.constant 0 : i32
    %c0_i32_0 = arith.constant 0 : i32
    %c0_i32_1 = arith.constant 0 : i32
    return %c0_i32, %c0_i32_0 : i32, i32
  }
  func.func @transform_4(%arg0: i32) -> (i32, i32) {
    %c0_i32 = arith.constant 0 : i32
    %c0_i32_0 = arith.constant 0 : i32
    return %arg0, %c0_i32 : i32, i32
  }
}

</mosaic_0001>

<llo_original>
// kernel: tpu_custom_call.1
$region0: #{tpu_custom_call.1}
  #allocation0 [shape = 'u32[]', space=smem, size = 0x4, offset = 0x4, fixed_abs, tag = 'smem constant byte address 0x4 - core index']
  #allocation1 [shape = 'u32[72,128]{1,0:T(1,128)}', space=vmem, size = 0x9000, scoped, tag = 'internal scratch']
  %s0 = inlined_call_operand.vmem [shape: f32[16,96], index: 0, kind: input, shape index: {}]
  %s1 = inlined_call_operand.vmem [shape: bf16[96,32], index: 1, kind: input, shape index: {}]
  %s2 = inlined_call_operand.vmem [shape: f32[1,32], index: 2, kind: input, shape index: {}]
  %s3 = inlined_call_operand.vmem [shape: f32[1,32], index: 3, kind: input, shape index: {}]
  %s4 = inlined_call_operand.hbm [shape: f32[16,32], index: 4, kind: output, shape index: {}]
  %s5 = sld [smem:[#allocation0]]
  $region26: #{tpu_custom_call.1} parent=0
    _
  %s7 = ssub.s32 1, %s5
  %s8 = scalar_select 0, %s7, %s5
  $region1: #{tpu_custom_call.1} parent=0
    #allocation2 [shape = 'u8[8192]{0}', space=vmem, size = 0x2000, scoped, tag = 'output window, operand 0, single buffered']
    #allocation3 [shape = 's32[1]{0}', space=sflag, size = 0x4, scoped, tag = 'scoped memory for tpu_custom_call.1']
    %9 = vsyncpa [#allocation3], 0
    // Predicated region
    $region2: #{tpu_custom_call.1} parent=1 // pred_check
      _
    $region3: #{tpu_custom_call.1} parent=1 // pred_check_branch
      %11 = sbr.rel (0) target = $region5
    $region4: #{tpu_custom_call.1} parent=1 // pred_region
      _
    $region5: #{tpu_custom_call.1} parent=1 // pred_fallthru
      _
    // Predicated region
    $region6: #{tpu_custom_call.1} parent=1 // pred_check
      _
    $region7: #{tpu_custom_call.1} parent=1 // pred_check_branch
      %13 = sbr.rel (0) target = $region9
    $region8: #{tpu_custom_call.1} parent=1 // pred_region
      _
    $region9: #{tpu_custom_call.1} parent=1 // pred_fallthru
      _
    // Predicated region
    $region10: #{tpu_custom_call.1} parent=1 // pred_check
      _
    $region11: #{tpu_custom_call.1} parent=1 // pred_check_branch
      %15 = sbr.rel (0) target = $region13
    $region12: #{tpu_custom_call.1} parent=1 // pred_region
      _
    $region13: #{tpu_custom_call.1} parent=1 // pred_fallthru
      _
    // Predicated region
    $region14: #{tpu_custom_call.1} parent=1 // pred_check
      _
    $region15: #{tpu_custom_call.1} parent=1 // pred_check_branch
      %17 = sbr.rel (0) target = $region17
    $region16: #{tpu_custom_call.1} parent=1 // pred_region
      _
    $region17: #{tpu_custom_call.1} parent=1 // pred_fallthru
      _
    %v19 = vld [vmem:[%s0] sm:$0xff]
    %v20 = vld [vmem:[%s0 + $0x8] sm:$0xff]
    %v21 = vpack.c.bf16 %v20, %v19
    %v22 = vld [vmem:[%s1] sm:$0xf]
    %v23 = vld [vmem:[%s1 + $0x4] sm:$0xf]
    %v24 = vld [vmem:[%s1 + $0x8] sm:$0xf]
    %v25 = vld [vmem:[%s1 + $0xc] sm:$0xf]
    %v26 = vld [vmem:[%s1 + $0x10] sm:$0xf]
    %v27 = vld [vmem:[%s1 + $0x14] sm:$0xf]
    %v28 = vld [vmem:[%s1 + $0x18] sm:$0xf]
    %v29 = vld [vmem:[%s1 + $0x1c] sm:$0xf]
    %v30 = vld [vmem:[%s1 + $0x20] sm:$0xf]
    %v31 = vld [vmem:[%s1 + $0x24] sm:$0xf]
    %v32 = vld [vmem:[%s1 + $0x28] sm:$0xf]
    %v33 = vld [vmem:[%s1 + $0x2c] sm:$0xf]
    %v46 = vunpack.c.l.b16 %v22
    %v47 = vunpack.c.l.b16 %v23
    %v48 = vunpack.c.l.b16 %v24
    %v49 = vunpack.c.l.b16 %v25
    %v50 = vunpack.c.l.b16 %v26
    %v51 = vunpack.c.l.b16 %v27
    %v52 = vunpack.c.l.b16 %v28
    %v53 = vunpack.c.l.b16 %v29
    %v54 = vunpack.c.l.b16 %v30
    %v55 = vunpack.c.l.b16 %v31
    %v56 = vunpack.c.l.b16 %v32
    %v57 = vunpack.c.l.b16 %v33
    %v58 = vpack.c.b16 %v47, %v46
    %v59 = vpack.c.b16 %v49, %v48
    %v60 = vpack.c.b16 %v51, %v50
    %v61 = vpack.c.b16 %v53, %v52
    %v62 = vpack.c.b16 %v55, %v54
    %v63 = vpack.c.b16 %v57, %v56
    %vm70 = vcmask 785408
    %v72 = vsel %vm70, %v21, 0
    %74 = vmatpush.bf16.msra.mxu0 0
    %75 = vmatpush.bf16.msra.mxu0 0
    %76 = vmatpush.bf16.msra.mxu0 %v63
    %77 = vmatpush.bf16.msra.mxu0 %v62
    %78 = vmatpush.bf16.msra.mxu0 %v61
    %79 = vmatpush.bf16.msra.mxu0 %v60
    %80 = vmatpush.bf16.msra.mxu0 %v59
    %81 = vmatpush.bf16.msra.mxu0 %v58
    %82 = vmatmul.bf16.gmra.mxu0 %v72
    %v83 = vpop.f32.mrf.mxu0
    %v84 = vadd.f32 0.0, %v83
    %v85 = vpop.f32.mrf.mxu0
    %v86 = vadd.f32 0.0, %v85
    %87 = vdwg.mxu0
    %v88 = vld [vmem:[%s2] sm:$0x1]
    %v90 = vperm.slane %v88, 0
    %v92 = vmul.f32 %v84, %v90
    %v93 = vmul.f32 %v86, %v90
    %v94 = vld [vmem:[%s3] sm:$0x1]
    %v96 = vperm.slane %v94, 0
    %v98 = vadd.f32 %v92, %v96
    %v99 = vadd.f32 %v93, %v96
    %v100 = vtanh.pop %v98
    %v101 = vtanh.pop %v99
    %vm102 = vcmask 261120
    %103 = vst.msk [vmem:[#allocation2] sm:$0xff] %vm102, %v100
    %104 = vst.msk [vmem:[#allocation2 + $0x8] sm:$0xff] %vm102, %v101
    // Predicated region
    $region18: #{tpu_custom_call.1} parent=1 // pred_check
      _
    $region19: #{tpu_custom_call.1} parent=1 // pred_check_branch
      %106 = sbr.rel (0) target = $region21
    $region20: #{tpu_custom_call.1} parent=1 // pred_region
      %108 = vsyncadd [#allocation3], 0
      %s109 = sshll.u32 [#allocation2], 4
      %s110 = int_to_ptr.vmem [resolvable:$true] %s109
      %s111 = sshll.u32 %s4, 4
      %s112 = int_to_ptr.hbm [resolvable:$true] %s111
      %117 = dma.vmem_to_hbm [thread:$0]  %s110, 256, %s112, [#allocation3], 128, 128, 8
    $region21: #{tpu_custom_call.1} parent=1 // pred_fallthru
      _
    // Predicated region
    $region22: #{tpu_custom_call.1} parent=1 // pred_check
      _
    $region23: #{tpu_custom_call.1} parent=1 // pred_check_branch
      %119 = sbr.rel (0) target = $region25
    $region24: #{tpu_custom_call.1} parent=1 // pred_region
      %121 = dma.done [#allocation3], 256
    $region25: #{tpu_custom_call.1} parent=1 // pred_fallthru
      _
    %122 = vsyncpa [#allocation3], 1

</llo_original>
